<compile_context>
chip_gen: v6e
topology: v6e:2x2x1
jax: 0.10.0
libtpu: 0.0.40
codegen_flags: <defaults>
</compile_context>

<pallas_src>
import jax
import jax.numpy as jnp
import numpy as np
from jax import lax
from jax.experimental import pallas as pl
from jax.experimental.pallas import tpu as pltpu


def _round_up(x, m):
    return ((x + m - 1) // m) * m


def _vmem_capacity_bytes():
    try:
        return int(pltpu.get_tpu_info().vmem_capacity_bytes)
    except Exception:
        return 64 * 1024 * 1024   # conservative (v7x per-TC)


def _make_tcn_kernel(K, dil, pad, TL, neg_slope, use_res_conv, final):
    def leaky(v):            # elementwise math stays in f32 (VPU)
        return jnp.where(v >= 0, v, neg_slope * v)

    def kernel(xc_ref, w1_ref, b1_ref, w2_ref, b2_ref, wr_ref, br_ref,
               o_ref, xh_ref, h1h_ref):
        l = pl.program_id(1)

        if pad > 0:
            @pl.when(l == 0)
            def _():
                # Sequence start: the causal left padding is zeros, both for x
                # (conv1) and for h1 = leaky(conv1(x)) (conv2's padded input).
                xh_ref[...] = jnp.zeros_like(xh_ref)
                h1h_ref[...] = jnp.zeros_like(h1h_ref)

        x_cur = xc_ref[...]                                   # (C_in_p, TL) bf16

        # ---- conv1 (causal, dilated): K taps folded into ONE MXU matmul ----
        if pad > 0:
            xw = jnp.concatenate([xh_ref[...], x_cur], axis=1)   # (C_in_p, pad+TL)
        else:
            xw = x_cur
        x1 = jnp.concatenate(
            [xw[:, j * dil: j * dil + TL] for j in range(K)], axis=0)  # (K*C_in_p, TL)
        h1 = jnp.dot(w1_ref[...], x1, preferred_element_type=jnp.float32)
        h1 = leaky(h1 + b1_ref[...])                          # (C_out_p, TL) f32
        h1b = h1.astype(jnp.bfloat16)

        # ---- conv2 (causal, dilated), same folded single-matmul form ----
        if pad > 0:
            h1w = jnp.concatenate([h1h_ref[...], h1b], axis=1)    # (C_out_p, pad+TL)
        else:
            h1w = h1b
        x2 = jnp.concatenate(
            [h1w[:, j * dil: j * dil + TL] for j in range(K)], axis=0)  # (K*C_out_p, TL)
        h2 = jnp.dot(w2_ref[...], x2, preferred_element_type=jnp.float32)
        h2 = leaky(h2 + b2_ref[...])                          # (C_out_p, TL) f32

        # ---- residual path (current x tile, no extra DMA) ----
        if use_res_conv:
            res = jnp.dot(wr_ref[...], x_cur, preferred_element_type=jnp.float32)
            res = res + br_ref[...]
        else:
            # TODO(synk): identity residual uses the bf16-rounded x tile; feed a
            # separate f32 x input if this block is stacked very deep.
            res = x_cur.astype(jnp.float32)

        out = h2 + res
        if final:
            out = leaky(out)
        o_ref[...] = out.astype(o_ref.dtype)

        # ---- carry the pad-wide halos of x and h1 to the next time tile ----
        if pad > 0:
            xh_ref[...] = x_cur[:, TL - pad:]
            h1h_ref[...] = h1b[:, TL - pad:]

    return kernel


def tcn_block_pallas(x, params, *, kernel_size, dilation, neg_slope=0.01,
                     final=False, tl=None):
    """x: (B, C_in, L) float32. params: PyTorch-layout conv weights."""
    B, C_in, L = x.shape
    w1, b1 = params["w1"], params["b1"]        # (C_out, C_in, K), (C_out,)
    w2, b2 = params["w2"], params["b2"]        # (C_out, C_out, K), (C_out,)
    C_out = w1.shape[0]
    K = int(kernel_size)
    dil = int(dilation)
    pad = dil * (K - 1)
    use_res_conv = C_in != C_out

    # ---- channel padding to sublane multiples of 8 ----
    C_in_p = _round_up(C_in, 8)
    C_out_p = _round_up(C_out, 8)

    # ---- lane-aligned time tile, sized from the device VMEM capacity ----
    vmem_cap = _vmem_capacity_bytes()
    tl_cap = 2048 if vmem_cap >= 100 * 1024 * 1024 else 512   # v5e/v6e vs v7x
    if tl is None:
        TL = max(128, _round_up(pad, 128), min(_round_up(L, 128), tl_cap))
    else:
        TL = int(tl)
        assert TL % 128 == 0 and TL >= pad, \
            "tl must be a multiple of 128 and >= dilation*(kernel_size-1)"
    # NOTE: very deep dilation (pad > tl_cap) inflates TL; re-check VMEM then.
    L_pad = _round_up(L, TL)
    nL = L_pad // TL

    # x padded to (C_in_p, L_pad), bf16.  No synthetic left-halo tile: the
    # causal zero padding lives in the carried VMEM scratch.
    x_full = jnp.zeros((B, C_in_p, L_pad), jnp.bfloat16)
    x_full = x_full.at[:, :C_in, :L].set(x.astype(jnp.bfloat16))

    # ---- fold K taps into the contraction dim: (C_out,C_in,K) -> (C_out_p, K*C_in_p)
    w1_p = jnp.zeros((C_out_p, K, C_in_p), jnp.float32)
    w1_p = w1_p.at[:C_out, :, :C_in].set(jnp.transpose(w1, (0, 2, 1)).astype(jnp.float32))
    w1_f = w1_p.reshape(C_out_p, K * C_in_p).astype(jnp.bfloat16)

    w2_p = jnp.zeros((C_out_p, K, C_out_p), jnp.float32)
    w2_p = w2_p.at[:C_out, :, :C_out].set(jnp.transpose(w2, (0, 2, 1)).astype(jnp.float32))
    w2_f = w2_p.reshape(C_out_p, K * C_out_p).astype(jnp.bfloat16)

    b1_c = jnp.zeros((C_out_p, 1), jnp.float32).at[:C_out, 0].set(b1.astype(jnp.float32))
    b2_c = jnp.zeros((C_out_p, 1), jnp.float32).at[:C_out, 0].set(b2.astype(jnp.float32))

    if use_res_conv:
        wr = params["wr"].reshape(C_out, C_in).astype(jnp.float32)   # 1x1 conv
        br = params["br"].astype(jnp.float32)
        wr_p = jnp.zeros((C_out_p, C_in_p), jnp.float32).at[:C_out, :C_in].set(wr)
        wr_p = wr_p.astype(jnp.bfloat16)
        br_c = jnp.zeros((C_out_p, 1), jnp.float32).at[:C_out, 0].set(br)
    else:
        wr_p = jnp.zeros((C_out_p, C_in_p), jnp.bfloat16)            # unused dummies
        br_c = jnp.zeros((C_out_p, 1), jnp.float32)

    kernel = _make_tcn_kernel(K, dil, pad, TL, neg_slope, use_res_conv, final)

    halo = max(pad, 1)   # zero-width scratch is not allocatable; unused if pad == 0
    grid_spec = pltpu.PrefetchScalarGridSpec(
        num_scalar_prefetch=0,
        grid=(B, nL),
        in_specs=[
            pl.BlockSpec((None, C_in_p, TL), lambda b, l: (b, 0, l)),      # x tile
            pl.BlockSpec((C_out_p, K * C_in_p), lambda b, l: (0, 0)),      # w1 (folded)
            pl.BlockSpec((C_out_p, 1), lambda b, l: (0, 0)),               # b1
            pl.BlockSpec((C_out_p, K * C_out_p), lambda b, l: (0, 0)),     # w2 (folded)
            pl.BlockSpec((C_out_p, 1), lambda b, l: (0, 0)),               # b2
            pl.BlockSpec((C_out_p, C_in_p), lambda b, l: (0, 0)),          # wr (1x1 res)
            pl.BlockSpec((C_out_p, 1), lambda b, l: (0, 0)),               # br
        ],
        out_specs=pl.BlockSpec((None, C_out_p, TL), lambda b, l: (b, 0, l)),
        scratch_shapes=[
            pltpu.VMEM((C_in_p, halo), jnp.bfloat16),    # carried x halo
            pltpu.VMEM((C_out_p, halo), jnp.bfloat16),   # carried h1 halo
        ])

    vmem_limit = int(min(vmem_cap * 3 // 5, 100 * 1024 * 1024))

    out = pl.pallas_call(
        kernel,
        out_shape=jax.ShapeDtypeStruct((B, C_out_p, L_pad), jnp.float32),
        grid_spec=grid_spec,
        compiler_params=pltpu.CompilerParams(
            # batch axis "parallel" (megacore); time axis carries the halo
            # scratches across tiles, so it must stay "arbitrary".
            dimension_semantics=("parallel", "arbitrary"),
            vmem_limit_bytes=vmem_limit),
    )(x_full, w1_f, b1_c, w2_f, b2_c, wr_p, br_c)

    if C_out_p != C_out or L_pad != L:
        out = out[:, :C_out, :L]
    return out


# ---------------- pure-JAX reference (mirrors the PyTorch module) -------------
def _causal_conv1d_ref(x, w, b, dilation):
    pad = dilation * (w.shape[-1] - 1)
    y = lax.conv_general_dilated(
        x, w, window_strides=(1,), padding=[(pad, 0)],
        rhs_dilation=(dilation,), dimension_numbers=("NCH", "OIH", "NCH"))
    return y + b[None, :, None]


def tcn_block_ref(x, params, *, kernel_size, dilation, neg_slope=0.01, final=False):
    leaky = lambda v: jnp.where(v >= 0, v, neg_slope * v)
    h = leaky(_causal_conv1d_ref(x, params["w1"], params["b1"], dilation))
    h = leaky(_causal_conv1d_ref(h, params["w2"], params["b2"], dilation))
    C_in, C_out = x.shape[1], params["w1"].shape[0]
    if C_in != C_out:
        res = _causal_conv1d_ref(x, params["wr"], params["br"], 1)
    else:
        res = x
    out = h + res
    return leaky(out) if final else out


if __name__ == "__main__":
    key = jax.random.PRNGKey(0)
    ks = jax.random.split(key, 12)

    # Case 1: channel-changing residual (1x1 conv); tl=128 with L=300 gives 3
    # time tiles so the carried x / h1 halos are actually exercised.
    B, C_in, C_out, L = 2, 4, 8, 300
    kernel_size, dilation = 3, 2
    params1 = {
        "w1": 0.2 * jax.random.normal(ks[0], (C_out, C_in, kernel_size), jnp.float32),
        "b1": 0.1 * jax.random.normal(ks[1], (C_out,), jnp.float32),
        "w2": 0.2 * jax.random.normal(ks[2], (C_out, C_out, kernel_size), jnp.float32),
        "b2": 0.1 * jax.random.normal(ks[3], (C_out,), jnp.float32),
        "wr": 0.2 * jax.random.normal(ks[4], (C_out, C_in, 1), jnp.float32),
        "br": 0.1 * jax.random.normal(ks[5], (C_out,), jnp.float32),
    }
    x1 = jax.random.normal(ks[6], (B, C_in, L), jnp.float32)

    out1 = tcn_block_pallas(x1, params1, kernel_size=kernel_size,
                            dilation=dilation, tl=128)
    out1 = jax.block_until_ready(out1)
    ref1 = tcn_block_ref(x1, params1, kernel_size=kernel_size, dilation=dilation)
    assert out1.shape == (B, C_out, L)
    # bf16 MXU inputs with f32 accumulation -> loosened tolerance vs f32 reference.
    np.testing.assert_allclose(np.asarray(out1), np.asarray(ref1),
                               rtol=5e-2, atol=5e-2)

    # Case 2: identity residual (C_in == C_out) with the final activation.
    C = 8
    params2 = {
        "w1": 0.2 * jax.random.normal(ks[7], (C, C, kernel_size), jnp.float32),
        "b1": 0.1 * jax.random.normal(ks[8], (C,), jnp.float32),
        "w2": 0.2 * jax.random.normal(ks[9], (C, C, kernel_size), jnp.float32),
        "b2": 0.1 * jax.random.normal(ks[10], (C,), jnp.float32),
    }
    x2 = jax.random.normal(ks[11], (B, C, L), jnp.float32)

    out2 = tcn_block_pallas(x2, params2, kernel_size=kernel_size,
                            dilation=dilation, final=True, tl=128)
    out2 = jax.block_until_ready(out2)
    ref2 = tcn_block_ref(x2, params2, kernel_size=kernel_size,
                         dilation=dilation, final=True)
    assert out2.shape == (B, C, L)
    np.testing.assert_allclose(np.asarray(out2), np.asarray(ref2),
                               rtol=5e-2, atol=5e-2)

    print("KERNEL_OK")
</pallas_src>

<mosaic_0001>
module attributes {stable_mosaic.version = 11 : i64} {
  func.func @kernel(%arg0: i32, %arg1: i32, %arg2: memref<1x8x128xbf16, #tpu.memory_space<vmem>>, %arg3: memref<8x24xbf16, #tpu.memory_space<vmem>>, %arg4: memref<8x1xf32, #tpu.memory_space<vmem>>, %arg5: memref<8x24xbf16, #tpu.memory_space<vmem>>, %arg6: memref<8x1xf32, #tpu.memory_space<vmem>>, %arg7: memref<8x8xbf16, #tpu.memory_space<vmem>>, %arg8: memref<8x1xf32, #tpu.memory_space<vmem>>, %arg9: memref<1x8x128xf32, #tpu.memory_space<vmem>>, %arg10: memref<8x4xbf16, #tpu.memory_space<vmem>>, %arg11: memref<8x4xbf16, #tpu.memory_space<vmem>>) attributes {dimension_semantics = [#tpu.dimension_semantics<parallel>, #tpu.dimension_semantics<arbitrary>], iteration_bounds = array<i64: 2, 3>, scalar_prefetch = 0 : i64, scratch_operands = 2 : i64, tpu.core_type = #tpu.core_type<tc>, window_params = [{transform_indices = @transform_0, window_bounds = array<i64: 1, 8, 128>}, {pipeline_mode = #tpu.pipeline_mode<synchronous>, transform_indices = @transform_1, window_bounds = array<i64: 8, 24>}, {pipeline_mode = #tpu.pipeline_mode<synchronous>, transform_indices = @transform_2, window_bounds = array<i64: 8, 1>}, {pipeline_mode = #tpu.pipeline_mode<synchronous>, transform_indices = @transform_3, window_bounds = array<i64: 8, 24>}, {pipeline_mode = #tpu.pipeline_mode<synchronous>, transform_indices = @transform_4, window_bounds = array<i64: 8, 1>}, {pipeline_mode = #tpu.pipeline_mode<synchronous>, transform_indices = @transform_5, window_bounds = array<i64: 8, 8>}, {pipeline_mode = #tpu.pipeline_mode<synchronous>, transform_indices = @transform_6, window_bounds = array<i64: 8, 1>}, {transform_indices = @transform_7, window_bounds = array<i64: 1, 8, 128>}]} {
    %c0_i32 = arith.constant 0 : i32
    %0 = arith.cmpi eq, %arg1, %c0_i32 : i32
    %1 = arith.extui %0 : i1 to i32
    %c0_i32_0 = arith.constant 0 : i32
    %2 = arith.cmpi ne, %1, %c0_i32_0 : i32
    scf.if %2 {
      %cst_32 = arith.constant 0.000000e+00 : bf16
      %51 = vector.broadcast %cst_32 : bf16 to vector<8x4xbf16>
      %c0_33 = arith.constant 0 : index
      %c0_34 = arith.constant 0 : index
      %52 = vector.load %arg10[%c0_33, %c0_34] : memref<8x4xbf16, #tpu.memory_space<vmem>>, vector<8x4xbf16>
      tpu.vector_store %arg10[%c0_33, %c0_34], %51 {strides = array<i32>} : memref<8x4xbf16, #tpu.memory_space<vmem>>, vector<8x4xbf16>,
      %cst_35 = arith.constant 0.000000e+00 : bf16
      %53 = vector.broadcast %cst_35 : bf16 to vector<8x4xbf16>
      %c0_36 = arith.constant 0 : index
      %c0_37 = arith.constant 0 : index
      %54 = vector.load %arg11[%c0_36, %c0_37] : memref<8x4xbf16, #tpu.memory_space<vmem>>, vector<8x4xbf16>
      tpu.vector_store %arg11[%c0_36, %c0_37], %53 {strides = array<i32>} : memref<8x4xbf16, #tpu.memory_space<vmem>>, vector<8x4xbf16>,
    } else {
    }
    %c0 = arith.constant 0 : index
    %c0_1 = arith.constant 0 : index
    %c0_2 = arith.constant 0 : index
    %3 = vector.load %arg2[%c0, %c0_1, %c0_2] : memref<1x8x128xbf16, #tpu.memory_space<vmem>>, vector<1x8x128xbf16>
    %4 = vector.shape_cast %3 : vector<1x8x128xbf16> to vector<8x128xbf16>
    %c0_3 = arith.constant 0 : index
    %c0_4 = arith.constant 0 : index
    %5 = vector.load %arg10[%c0_3, %c0_4] : memref<8x4xbf16, #tpu.memory_space<vmem>>, vector<8x4xbf16>
    %6 = tpu.concatenate %5, %4 in 1 : vector<8x4xbf16>, vector<8x128xbf16> -> vector<8x132xbf16>
    %7 = vector.extract_strided_slice %6 {offsets = [0, 0], sizes = [8, 128], strides = [1, 1]} : vector<8x132xbf16> to vector<8x128xbf16>
    %8 = vector.extract_strided_slice %6 {offsets = [0, 2], sizes = [8, 128], strides = [1, 1]} : vector<8x132xbf16> to vector<8x128xbf16>
    %9 = vector.extract_strided_slice %6 {offsets = [0, 4], sizes = [8, 128], strides = [1, 1]} : vector<8x132xbf16> to vector<8x128xbf16>
    %10 = tpu.concatenate %7, %8, %9 in 0 : vector<8x128xbf16>, vector<8x128xbf16>, vector<8x128xbf16> -> vector<24x128xbf16>
    %c0_5 = arith.constant 0 : index
    %c0_6 = arith.constant 0 : index
    %11 = vector.load %arg3[%c0_5, %c0_6] : memref<8x24xbf16, #tpu.memory_space<vmem>>, vector<8x24xbf16>
    %cst = arith.constant dense<0.000000e+00> : vector<8x128xf32>
    %12 = tpu.matmul %11, %10, %cst {dimension_numbers = #tpu.dot_dimension_numbers<[1], [0], [0], [1], [0, 0, 1, 1], [], []>} : vector<8x24xbf16>, vector<24x128xbf16>, vector<8x128xf32> -> vector<8x128xf32>
    %c0_7 = arith.constant 0 : index
    %c0_8 = arith.constant 0 : index
    %13 = vector.load %arg4[%c0_7, %c0_8] : memref<8x1xf32, #tpu.memory_space<vmem>>, vector<8x1xf32>
    %14 = vector.broadcast %13 : vector<8x1xf32> to vector<8x128xf32>
    %15 = arith.addf %12, %14 : vector<8x128xf32>
    %cst_9 = arith.constant 0.000000e+00 : f32
    %16 = vector.broadcast %cst_9 : f32 to vector<8x128xf32>
    %17 = arith.cmpf oge, %15, %16 : vector<8x128xf32>
    %cst_10 = arith.constant 0.00999999977 : f32
    %18 = vector.broadcast %cst_10 : f32 to vector<8x128xf32>
    %19 = arith.mulf %18, %15 : vector<8x128xf32>
    %20 = arith.select %17, %15, %19 : vector<8x128xi1>, vector<8x128xf32>
    %21 = arith.truncf %20 : vector<8x128xf32> to vector<8x128xbf16>
    %c0_11 = arith.constant 0 : index
    %c0_12 = arith.constant 0 : index
    %22 = vector.load %arg11[%c0_11, %c0_12] : memref<8x4xbf16, #tpu.memory_space<vmem>>, vector<8x4xbf16>
    %23 = tpu.concatenate %22, %21 in 1 : vector<8x4xbf16>, vector<8x128xbf16> -> vector<8x132xbf16>
    %24 = vector.extract_strided_slice %23 {offsets = [0, 0], sizes = [8, 128], strides = [1, 1]} : vector<8x132xbf16> to vector<8x128xbf16>
    %25 = vector.extract_strided_slice %23 {offsets = [0, 2], sizes = [8, 128], strides = [1, 1]} : vector<8x132xbf16> to vector<8x128xbf16>
    %26 = vector.extract_strided_slice %23 {offsets = [0, 4], sizes = [8, 128], strides = [1, 1]} : vector<8x132xbf16> to vector<8x128xbf16>
    %27 = tpu.concatenate %24, %25, %26 in 0 : vector<8x128xbf16>, vector<8x128xbf16>, vector<8x128xbf16> -> vector<24x128xbf16>
    %c0_13 = arith.constant 0 : index
    %c0_14 = arith.constant 0 : index
    %28 = vector.load %arg5[%c0_13, %c0_14] : memref<8x24xbf16, #tpu.memory_space<vmem>>, vector<8x24xbf16>
    %cst_15 = arith.constant dense<0.000000e+00> : vector<8x128xf32>
    %29 = tpu.matmul %28, %27, %cst_15 {dimension_numbers = #tpu.dot_dimension_numbers<[1], [0], [0], [1], [0, 0, 1, 1], [], []>} : vector<8x24xbf16>, vector<24x128xbf16>, vector<8x128xf32> -> vector<8x128xf32>
    %c0_16 = arith.constant 0 : index
    %c0_17 = arith.constant 0 : index
    %30 = vector.load %arg6[%c0_16, %c0_17] : memref<8x1xf32, #tpu.memory_space<vmem>>, vector<8x1xf32>
    %31 = vector.broadcast %30 : vector<8x1xf32> to vector<8x128xf32>
    %32 = arith.addf %29, %31 : vector<8x128xf32>
    %cst_18 = arith.constant 0.000000e+00 : f32
    %33 = vector.broadcast %cst_18 : f32 to vector<8x128xf32>
    %34 = arith.cmpf oge, %32, %33 : vector<8x128xf32>
    %cst_19 = arith.constant 0.00999999977 : f32
    %35 = vector.broadcast %cst_19 : f32 to vector<8x128xf32>
    %36 = arith.mulf %35, %32 : vector<8x128xf32>
    %37 = arith.select %34, %32, %36 : vector<8x128xi1>, vector<8x128xf32>
    %c0_20 = arith.constant 0 : index
    %c0_21 = arith.constant 0 : index
    %38 = vector.load %arg7[%c0_20, %c0_21] : memref<8x8xbf16, #tpu.memory_space<vmem>>, vector<8x8xbf16>
    %cst_22 = arith.constant dense<0.000000e+00> : vector<8x128xf32>
    %39 = tpu.matmul %38, %4, %cst_22 {dimension_numbers = #tpu.dot_dimension_numbers<[1], [0], [0], [1], [0, 0, 1, 1], [], []>} : vector<8x8xbf16>, vector<8x128xbf16>, vector<8x128xf32> -> vector<8x128xf32>
    %c0_23 = arith.constant 0 : index
    %c0_24 = arith.constant 0 : index
    %40 = vector.load %arg8[%c0_23, %c0_24] : memref<8x1xf32, #tpu.memory_space<vmem>>, vector<8x1xf32>
    %41 = vector.broadcast %40 : vector<8x1xf32> to vector<8x128xf32>
    %42 = arith.addf %39, %41 : vector<8x128xf32>
    %43 = arith.addf %37, %42 : vector<8x128xf32>
    %c0_25 = arith.constant 0 : index
    %c0_26 = arith.constant 0 : index
    %c0_27 = arith.constant 0 : index
    %44 = vector.load %arg9[%c0_25, %c0_26, %c0_27] : memref<1x8x128xf32, #tpu.memory_space<vmem>>, vector<1x8x128xf32>
    %45 = vector.shape_cast %44 : vector<1x8x128xf32> to vector<8x128xf32>
    %46 = vector.shape_cast %43 : vector<8x128xf32> to vector<1x8x128xf32>
    tpu.vector_store %arg9[%c0_25, %c0_26, %c0_27], %46 {strides = array<i32>} : memref<1x8x128xf32, #tpu.memory_space<vmem>>, vector<1x8x128xf32>,
    %47 = vector.extract_strided_slice %4 {offsets = [0, 124], sizes = [8, 4], strides = [1, 1]} : vector<8x128xbf16> to vector<8x4xbf16>
    %c0_28 = arith.constant 0 : index
    %c0_29 = arith.constant 0 : index
    %48 = vector.load %arg10[%c0_28, %c0_29] : memref<8x4xbf16, #tpu.memory_space<vmem>>, vector<8x4xbf16>
    tpu.vector_store %arg10[%c0_28, %c0_29], %47 {strides = array<i32>} : memref<8x4xbf16, #tpu.memory_space<vmem>>, vector<8x4xbf16>,
    %49 = vector.extract_strided_slice %21 {offsets = [0, 124], sizes = [8, 4], strides = [1, 1]} : vector<8x128xbf16> to vector<8x4xbf16>
    %c0_30 = arith.constant 0 : index
    %c0_31 = arith.constant 0 : index
    %50 = vector.load %arg11[%c0_30, %c0_31] : memref<8x4xbf16, #tpu.memory_space<vmem>>, vector<8x4xbf16>
    tpu.vector_store %arg11[%c0_30, %c0_31], %49 {strides = array<i32>} : memref<8x4xbf16, #tpu.memory_space<vmem>>, vector<8x4xbf16>,
    return
  }
  func.func @transform_0(%arg0: i32, %arg1: i32) -> (i32, i32, i32) {
    %c0_i32 = arith.constant 0 : i32
    %c0_i32_0 = arith.constant 0 : i32
    return %arg0, %c0_i32, %arg1 : i32, i32, i32
  }
  func.func @transform_1(%arg0: i32, %arg1: i32) -> (i32, i32) {
    %c0_i32 = arith.constant 0 : i32
    %c0_i32_0 = arith.constant 0 : i32
    %c0_i32_1 = arith.constant 0 : i32
    return %c0_i32, %c0_i32_0 : i32, i32
  }
  func.func @transform_2(%arg0: i32, %arg1: i32) -> (i32, i32) {
    %c0_i32 = arith.constant 0 : i32
    %c0_i32_0 = arith.constant 0 : i32
    %c0_i32_1 = arith.constant 0 : i32
    return %c0_i32, %c0_i32_0 : i32, i32
  }
  func.func @transform_3(%arg0: i32, %arg1: i32) -> (i32, i32) {
    %c0_i32 = arith.constant 0 : i32
    %c0_i32_0 = arith.constant 0 : i32
    %c0_i32_1 = arith.constant 0 : i32
    return %c0_i32, %c0_i32_0 : i32, i32
  }
  func.func @transform_4(%arg0: i32, %arg1: i32) -> (i32, i32) {
    %c0_i32 = arith.constant 0 : i32
    %c0_i32_0 = arith.constant 0 : i32
    %c0_i32_1 = arith.constant 0 : i32
    return %c0_i32, %c0_i32_0 : i32, i32
  }
  func.func @transform_5(%arg0: i32, %arg1: i32) -> (i32, i32) {
    %c0_i32 = arith.constant 0 : i32
    %c0_i32_0 = arith.constant 0 : i32
    %c0_i32_1 = arith.constant 0 : i32
    return %c0_i32, %c0_i32_0 : i32, i32
  }
  func.func @transform_6(%arg0: i32, %arg1: i32) -> (i32, i32) {
    %c0_i32 = arith.constant 0 : i32
    %c0_i32_0 = arith.constant 0 : i32
    %c0_i32_1 = arith.constant 0 : i32
    return %c0_i32, %c0_i32_0 : i32, i32
  }
  func.func @transform_7(%arg0: i32, %arg1: i32) -> (i32, i32, i32) {
    %c0_i32 = arith.constant 0 : i32
    %c0_i32_0 = arith.constant 0 : i32
    return %arg0, %c0_i32, %arg1 : i32, i32, i32
  }
}

</mosaic_0001>

<llo_original>
// kernel: tpu_custom_call.1
$region0: #{tpu_custom_call.1}
  #allocation0 [shape = 'u32[]', space=smem, size = 0x4, offset = 0x4, fixed_abs, tag = 'smem constant byte address 0x4 - core index']
  #allocation1 [shape = 'u32[144,128]{1,0:T(1,128)}', space=vmem, size = 0x12000, scoped, tag = 'internal scratch']
  #allocation2 [shape = 'bf16[8,4]{1,0:T(8,128)(2,1)}', space=vmem, size = 0x800, scoped, tag = 'scratch operand']
  #allocation3 [shape = 'bf16[8,4]{1,0:T(8,128)(2,1)}', space=vmem, size = 0x800, scoped, tag = 'scratch operand']
  %s0 = inlined_call_operand.vmem [shape: bf16[2,8,384], index: 0, kind: input, shape index: {}]
  %s1 = inlined_call_operand.vmem [shape: bf16[8,24], index: 1, kind: input, shape index: {}]
  %s2 = inlined_call_operand.vmem [shape: f32[8,1], index: 2, kind: input, shape index: {}]
  %s3 = inlined_call_operand.vmem [shape: bf16[8,24], index: 3, kind: input, shape index: {}]
  %s4 = inlined_call_operand.vmem [shape: f32[8,1], index: 4, kind: input, shape index: {}]
  %s5 = inlined_call_operand.vmem [shape: bf16[8,8], index: 5, kind: input, shape index: {}]
  %s6 = inlined_call_operand.vmem [shape: f32[8,1], index: 6, kind: input, shape index: {}]
  %s7 = inlined_call_operand.hbm [shape: f32[2,8,384], index: 7, kind: output, shape index: {}]
  %s8 = sld [smem:[#allocation0]]
  $region65: #{tpu_custom_call.1} parent=0
    _
  %s10 = ssub.s32 1, %s8
  %s11 = scalar_select 0, %s10, %s8
  $region1: #{tpu_custom_call.1} parent=0
    #allocation4 [shape = 'u8[8192]{0}', space=vmem, size = 0x2000, scoped, tag = 'output window, operand 0']
    #allocation5 [shape = 's32[2]{0}', space=sflag, size = 0x8, scoped, tag = 'scoped memory for tpu_custom_call.1']
    %12 = vsyncpa [#allocation5], 0
    %s13 = scalar_lea.sflag [#allocation5], 1
    %14 = vsyncpa %s13, 0
    loop: start=0, step=1, limit=8
    $region2: #{tpu_custom_call.1} parent=1 // loop_pre_header
      _
    $region3: #{tpu_custom_call.1} parent=1 // loop_header
      %s16 = sphi 0, %s20
      %p17 = scmp.ge.s32.totalorder %s16, 8
      %s23 = sphi 0, %s35
      %s24 = sphi 0, %s31
      %s25 = sphi 0, %s23
      %s26 = sphi 0, %s24
      %s27 = sphi 0, %s25
      %s28 = sphi 0, %s26
      %s40 = sphi 0, %s42
      %s43 = sphi 0, %s40
      %s44 = sphi 0, %s43
      %s60 = sphi 0, %s44
      %s64 = sphi 0, %s64
      %s66 = sphi 0, %s64
      %s67 = sphi 0, %s66
      %s81 = sphi 0, %s67
      %s85 = sphi 0, %s85
      %s87 = sphi 0, %s85
      %s88 = sphi 0, %s87
      %s102 = sphi 0, %s88
      %s106 = sphi 0, %s106
      %s108 = sphi 0, %s106
      %s109 = sphi 0, %s108
      %s123 = sphi 0, %s109
      %s127 = sphi 0, %s127
      %s129 = sphi 0, %s127
      %s130 = sphi 0, %s129
      %s144 = sphi 0, %s130
      %s148 = sphi 0, %s148
      %s150 = sphi 0, %s148
      %s151 = sphi 0, %s150
      %s165 = sphi 0, %s151
      %s169 = sphi 0, %s169
      %s171 = sphi 0, %s169
      %s172 = sphi 0, %s171
      %s186 = sphi 0, %s172
      %s194 = sphi 0, %s196
      %s197 = sphi 0, %s194
      %s198 = sphi 0, %s197
      %s214 = sphi 0, %s198
    $region4: #{tpu_custom_call.1} parent=1 // loop_header_branch
      %19 = sbr.rel (%p17) target = $region8
    $region5: #{tpu_custom_call.1} parent=1 // loop_body
      %s21 = ssub.s32 %s16, 1
      %s22 = ssub.s32 %s16, 2
      %s29 = sadd.s32 1, %s24
      %p30 = scmp.ge.s32.totalorder %s29, 3
      %s31 = scalar_select %p30, 0, %s29
      %s32 = sadd.s32 1, %s23
      %s33 = scalar_select %p30, %s32, %s23
      %p34 = scmp.ge.s32.totalorder %s33, 2
      %s35 = scalar_select %p34, 0, %s33
      %s36 = ssub.s32 %s23, %s35
      %s37 = ssub.s32 %s24, %s31
      %s38 = sor.u32 %s36, %s37
      %p39 = scmp.eq.s32.totalorder %s38, 0
      %s41 = sadd.s32 %s40, 1
      %s42 = scalar_select %p39, %s40, %s41
      %p45 = pneg %p39
      %p46 = scmp.eq.s32.totalorder %s16, 5
      %p47 = por %p45, %p46
      %p48 = scmp.ne.s32.totalorder %s40, %s43
      %p49 = scmp.eq.s32.totalorder %s16, 0
      %p50 = por %p48, %p49
      %p51 = scmp.ne.s32.totalorder %s40, %s43
      %p52 = scmp.eq.s32.totalorder %s21, 5
      %p53 = por %p51, %p52
      %p54 = scmp.ne.s32.totalorder %s43, %s44
      %p55 = scmp.eq.s32.totalorder %s21, 0
      %p56 = por %p54, %p55
      %p57 = scmp.ne.s32.totalorder %s43, %s44
      %p58 = scmp.eq.s32.totalorder %s22, 5
      %p59 = por %p57, %p58
      %p61 = scmp.ne.s32.totalorder %s44, %s60
      %p62 = scmp.eq.s32.totalorder %s22, 0
      %p63 = por %p61, %p62
      %s65 = sadd.s32 %s64, 1
      %p68 = scmp.eq.s32.totalorder %s16, 5
      %p69 = scmp.ne.s32.totalorder %s64, %s66
      %p70 = scmp.eq.s32.totalorder %s16, 0
      %p71 = por %p69, %p70
      %p72 = scmp.ne.s32.totalorder %s64, %s66
      %p73 = scmp.eq.s32.totalorder %s21, 5
      %p74 = por %p72, %p73
      %p75 = scmp.ne.s32.totalorder %s66, %s67
      %p76 = scmp.eq.s32.totalorder %s21, 0
      %p77 = por %p75, %p76
      %p78 = scmp.ne.s32.totalorder %s66, %s67
      %p79 = scmp.eq.s32.totalorder %s22, 5
      %p80 = por %p78, %p79
      %p82 = scmp.ne.s32.totalorder %s67, %s81
      %p83 = scmp.eq.s32.totalorder %s22, 0
      %p84 = por %p82, %p83
      %s86 = sadd.s32 %s85, 1
      %p89 = scmp.eq.s32.totalorder %s16, 5
      %p90 = scmp.ne.s32.totalorder %s85, %s87
      %p91 = scmp.eq.s32.totalorder %s16, 0
      %p92 = por %p90, %p91
      %p93 = scmp.ne.s32.totalorder %s85, %s87
      %p94 = scmp.eq.s32.totalorder %s21, 5
      %p95 = por %p93, %p94
      %p96 = scmp.ne.s32.totalorder %s87, %s88
      %p97 = scmp.eq.s32.totalorder %s21, 0
      %p98 = por %p96, %p97
      %p99 = scmp.ne.s32.totalorder %s87, %s88
      %p100 = scmp.eq.s32.totalorder %s22, 5
      %p101 = por %p99, %p100
      %p103 = scmp.ne.s32.totalorder %s88, %s102
      %p104 = scmp.eq.s32.totalorder %s22, 0
      %p105 = por %p103, %p104
      %s107 = sadd.s32 %s106, 1
      %p110 = scmp.eq.s32.totalorder %s16, 5
      %p111 = scmp.ne.s32.totalorder %s106, %s108
      %p112 = scmp.eq.s32.totalorder %s16, 0
      %p113 = por %p111, %p112
      %p114 = scmp.ne.s32.totalorder %s106, %s108
      %p115 = scmp.eq.s32.totalorder %s21, 5
      %p116 = por %p114, %p115
      %p117 = scmp.ne.s32.totalorder %s108, %s109
      %p118 = scmp.eq.s32.totalorder %s21, 0
      %p119 = por %p117, %p118
      %p120 = scmp.ne.s32.totalorder %s108, %s109
      %p121 = scmp.eq.s32.totalorder %s22, 5
      %p122 = por %p120, %p121
      %p124 = scmp.ne.s32.totalorder %s109, %s123
      %p125 = scmp.eq.s32.totalorder %s22, 0
      %p126 = por %p124, %p125
      %s128 = sadd.s32 %s127, 1
      %p131 = scmp.eq.s32.totalorder %s16, 5
      %p132 = scmp.ne.s32.totalorder %s127, %s129
      %p133 = scmp.eq.s32.totalorder %s16, 0
      %p134 = por %p132, %p133
      %p135 = scmp.ne.s32.totalorder %s127, %s129
      %p136 = scmp.eq.s32.totalorder %s21, 5
      %p137 = por %p135, %p136
      %p138 = scmp.ne.s32.totalorder %s129, %s130
      %p139 = scmp.eq.s32.totalorder %s21, 0
      %p140 = por %p138, %p139
      %p141 = scmp.ne.s32.totalorder %s129, %s130
      %p142 = scmp.eq.s32.totalorder %s22, 5
      %p143 = por %p141, %p142
      %p145 = scmp.ne.s32.totalorder %s130, %s144
      %p146 = scmp.eq.s32.totalorder %s22, 0
      %p147 = por %p145, %p146
      %s149 = sadd.s32 %s148, 1
      %p152 = scmp.eq.s32.totalorder %s16, 5
      %p153 = scmp.ne.s32.totalorder %s148, %s150
      %p154 = scmp.eq.s32.totalorder %s16, 0
      %p155 = por %p153, %p154
      %p156 = scmp.ne.s32.totalorder %s148, %s150
      %p157 = scmp.eq.s32.totalorder %s21, 5
      %p158 = por %p156, %p157
      %p159 = scmp.ne.s32.totalorder %s150, %s151
      %p160 = scmp.eq.s32.totalorder %s21, 0
      %p161 = por %p159, %p160
      %p162 = scmp.ne.s32.totalorder %s150, %s151
      %p163 = scmp.eq.s32.totalorder %s22, 5
      %p164 = por %p162, %p163
      %p166 = scmp.ne.s32.totalorder %s151, %s165
      %p167 = scmp.eq.s32.totalorder %s22, 0
      %p168 = por %p166, %p167
      %s170 = sadd.s32 %s169, 1
      %p173 = scmp.eq.s32.totalorder %s16, 5
      %p174 = scmp.ne.s32.totalorder %s169, %s171
      %p175 = scmp.eq.s32.totalorder %s16, 0
      %p176 = por %p174, %p175
      %p177 = scmp.ne.s32.totalorder %s169, %s171
      %p178 = scmp.eq.s32.totalorder %s21, 5
      %p179 = por %p177, %p178
      %p180 = scmp.ne.s32.totalorder %s171, %s172
      %p181 = scmp.eq.s32.totalorder %s21, 0
      %p182 = por %p180, %p181
      %p183 = scmp.ne.s32.totalorder %s171, %s172
      %p184 = scmp.eq.s32.totalorder %s22, 5
      %p185 = por %p183, %p184
      %p187 = scmp.ne.s32.totalorder %s172, %s186
      %p188 = scmp.eq.s32.totalorder %s22, 0
      %p189 = por %p187, %p188
      %s190 = ssub.s32 %s23, %s35
      %s191 = ssub.s32 %s24, %s31
      %s192 = sor.u32 %s190, %s191
      %p193 = scmp.eq.s32.totalorder %s192, 0
      %s195 = sadd.s32 %s194, 1
      %s196 = scalar_select %p193, %s194, %s195
      %p199 = pneg %p193
      %p200 = scmp.eq.s32.totalorder %s16, 5
      %p201 = por %p199, %p200
      %p202 = scmp.ne.s32.totalorder %s194, %s197
      %p203 = scmp.eq.s32.totalorder %s16, 0
      %p204 = por %p202, %p203
      %p205 = scmp.ne.s32.totalorder %s194, %s197
      %p206 = scmp.eq.s32.totalorder %s21, 5
      %p207 = por %p205, %p206
      %p208 = scmp.ne.s32.totalorder %s197, %s198
      %p209 = scmp.eq.s32.totalorder %s21, 0
      %p210 = por %p208, %p209
      %p211 = scmp.ne.s32.totalorder %s197, %s198
      %p212 = scmp.eq.s32.totalorder %s22, 5
      %p213 = por %p211, %p212
      %p215 = scmp.ne.s32.totalorder %s198, %s214
      %p216 = scmp.eq.s32.totalorder %s22, 0
      %p217 = por %p215, %p216
      %p218 = scmp.le.s32.totalorder 1, %s16
      %p219 = scmp.lt.s32.totalorder %s16, 7
      %p220 = pnand %p218, %p219
      %p221 = pneg %p220
      // Predicated region
      $region9: #{tpu_custom_call.1} parent=5 // pred_check
        _
      $region10: #{tpu_custom_call.1} parent=5 // pred_check_branch
        %223 = sbr.rel (%p220) target = $region12
      $region11: #{tpu_custom_call.1} parent=5 // pred_region
        %s224 = ssub.s32 %s16, 1
        // Predicated region
        $region13: #{tpu_custom_call.1} parent=11 // pred_check
          %p225 = pneg %p77
        $region14: #{tpu_custom_call.1} parent=11 // pred_check_branch
          %227 = sbr.rel (%p225) target = $region16
        $region15: #{tpu_custom_call.1} parent=11 // pred_region
          _
        $region16: #{tpu_custom_call.1} parent=11 // pred_fallthru
          _
        // Predicated region
        $region17: #{tpu_custom_call.1} parent=11 // pred_check
          %p228 = pneg %p98
        $region18: #{tpu_custom_call.1} parent=11 // pred_check_branch
          %230 = sbr.rel (%p228) target = $region20
        $region19: #{tpu_custom_call.1} parent=11 // pred_region
          _
        $region20: #{tpu_custom_call.1} parent=11 // pred_fallthru
          _
        // Predicated region
        $region21: #{tpu_custom_call.1} parent=11 // pred_check
          %p231 = pneg %p119
        $region22: #{tpu_custom_call.1} parent=11 // pred_check_branch
          %233 = sbr.rel (%p231) target = $region24
        $region23: #{tpu_custom_call.1} parent=11 // pred_region
          _
        $region24: #{tpu_custom_call.1} parent=11 // pred_fallthru
          _
        // Predicated region
        $region25: #{tpu_custom_call.1} parent=11 // pred_check
          %p234 = pneg %p140
        $region26: #{tpu_custom_call.1} parent=11 // pred_check_branch
          %236 = sbr.rel (%p234) target = $region28
        $region27: #{tpu_custom_call.1} parent=11 // pred_region
          _
        $region28: #{tpu_custom_call.1} parent=11 // pred_fallthru
          _
        // Predicated region
        $region29: #{tpu_custom_call.1} parent=11 // pred_check
          %p237 = pneg %p161
        $region30: #{tpu_custom_call.1} parent=11 // pred_check_branch
          %239 = sbr.rel (%p237) target = $region32
        $region31: #{tpu_custom_call.1} parent=11 // pred_region
          _
        $region32: #{tpu_custom_call.1} parent=11 // pred_fallthru
          _
        // Predicated region
        $region33: #{tpu_custom_call.1} parent=11 // pred_check
          %p240 = pneg %p182
        $region34: #{tpu_custom_call.1} parent=11 // pred_check_branch
          %242 = sbr.rel (%p240) target = $region36
        $region35: #{tpu_custom_call.1} parent=11 // pred_region
          _
        $region36: #{tpu_custom_call.1} parent=11 // pred_fallthru
          _
      $region12: #{tpu_custom_call.1} parent=5 // pred_fallthru
        _
      %p243 = scmp.lt.s32.totalorder %s16, 6
      // Predicated region
      $region37: #{tpu_custom_call.1} parent=5 // pred_check
        %p244 = pneg %p243
      $region38: #{tpu_custom_call.1} parent=5 // pred_check_branch
        %246 = sbr.rel (%p244) target = $region40
      $region39: #{tpu_custom_call.1} parent=5 // pred_region
        // Predicated region
        $region41: #{tpu_custom_call.1} parent=39 // pred_check
          %p247 = pneg %p50
        $region42: #{tpu_custom_call.1} parent=39 // pred_check_branch
          %249 = sbr.rel (%p247) target = $region44
        $region43: #{tpu_custom_call.1} parent=39 // pred_region
          %p250 = scmp.lt.s32.totalorder %s23, 1
          %s251 = scalar_select %p250, %s23, 1
          %p252 = scmp.lt.s32.totalorder %s24, 2
          %s253 = scalar_select %p252, %s24, 2
          %s254 = smul.addr %s251, 3
          %s255 = sadd.s32 %s253, %s254
          %s256 = smul.addr %s255, 4
          %s257 = scalar_lea.vmem %s0, %s256
        $region44: #{tpu_custom_call.1} parent=39 // pred_fallthru
          _
      $region40: #{tpu_custom_call.1} parent=5 // pred_fallthru
        _
      %p258 = scmp.le.s32.totalorder 1, %s16
      %p259 = scmp.lt.s32.totalorder %s16, 7
      %p260 = pnand %p258, %p259
      %p261 = pneg %p260
      // Predicated region
      $region45: #{tpu_custom_call.1} parent=5 // pred_check
        _
      $region46: #{tpu_custom_call.1} parent=5 // pred_check_branch
        %263 = sbr.rel (%p260) target = $region48
      $region47: #{tpu_custom_call.1} parent=5 // pred_region
        %s264 = ssub.s32 %s16, 1
        %p265 = scmp.lt.s32.totalorder %s25, 1
        %s266 = scalar_select %p265, %s25, 1
        %p267 = scmp.lt.s32.totalorder %s26, 2
        %s268 = scalar_select %p267, %s26, 2
        %s269 = smul.addr %s266, 3
        %s270 = sadd.s32 %s268, %s269
        %s271 = smul.addr %s270, 4
        %s272 = scalar_lea.vmem %s0, %s271
        %p273 = pneg %p56
        %p274 = pneg %p53
        %p275 = pneg %p77
        %p276 = pneg %p74
        %p277 = pneg %p98
        %p278 = pneg %p95
        %p279 = pneg %p119
        %p280 = pneg %p116
        %p281 = pneg %p140
        %p282 = pneg %p137
        %p283 = pneg %p161
        %p284 = pneg %p158
        %p285 = pneg %p182
        %p286 = pneg %p179
        %p287 = pneg %p210
        %p288 = pneg %p207
        %s289 = sand.u32 %s197, 1
        %s290 = scalar_lea.sflag [#allocation5], %s289
        %s291 = sand.u32 %s197, 1
        %s292 = smul.addr %s291, 8
        %s293 = scalar_lea.vmem [#allocation4], %s292
        %p294 = scmp.lt.s32.totalorder %s25, 1
        %s295 = scalar_select %p294, %s25, 1
        %p296 = scmp.lt.s32.totalorder %s26, 2
        %s297 = scalar_select %p296, %s26, 2
        %s298 = smul.addr %s295, 3
        %s299 = sadd.s32 %s297, %s298
        %s300 = smul.addr %s299, 4
        %s301 = scalar_lea.vmem %s0, %s300
        %p303 = scmp.eq.s32.totalorder %s26, 0
        // Predicated region
        $region49: #{tpu_custom_call.1} parent=47 // pred_check
          %p304 = pneg %p303
        $region50: #{tpu_custom_call.1} parent=47 // pred_check_branch
          %306 = sbr.rel (%p304) target = $region52
        $region51: #{tpu_custom_call.1} parent=47 // pred_region
          %vm307 = vcmask 27648
          %308 = vst.msk [vmem:[#allocation2] sm:$0xf] %vm307, 0
          %309 = vst.msk [vmem:[#allocation3] sm:$0xf] %vm307, 0
        $region52: #{tpu_custom_call.1} parent=47 // pred_fallthru
          _
        %v310 = vld [vmem:[%s301] sm:$0xf]
        %v311 = vld [vmem:[#allocation2] sm:$0xf]
        %v313 = vunpack.c.l.b16 %v310
        %v314 = vpack.c.b16 %v313, %v313
        %315 = vrot.lane.b32.xlu0 %v314, 4
        %v316 = vpop.permute.xlu0 %315
        %vm317 = vcmask 31744
        %v320 = vsel %vm317, %v311, %v316
        %v322 = vrot.slane %v320, 4
        %v323 = vrot.slane %v316, 4
        %324 = vrot.lane.b32.xlu0 %v322, 126
        %v325 = vpop.permute.xlu0 %324
        %326 = vrot.lane.b32.xlu0 %v323, 126
        %v327 = vpop.permute.xlu0 %326
        %vm328 = vcmask 1031168
        %v329 = vsel %vm328, %v325, %v327
        %330 = vrot.lane.b32.xlu0 %v320, 124
        %v331 = vpop.permute.xlu0 %330
        %332 = vrot.lane.b32.xlu0 %v316, 124
        %v333 = vpop.permute.xlu0 %332
        %vm334 = vcmask 1014784
        %v335 = vsel %vm334, %v331, %v333
        %vm336 = vcmask 1043456
        %v338 = vsel %vm336, %v320, %v329
        %v340 = vld [vmem:[%s1] sm:$0xf]
        %v341 = vld [vmem:[%s2] sm:$0xff]
        %343 = vset.pattern.permute.xlu0 0
        %344 = vperm.xlu0 %343, %v341
        %v345 = vpop.permute.xlu0 %344
        %vm347 = vcmask 195584
        %v349 = vsel %vm347, %v340, 0
        %v352 = vsel %vm336, %v335, 0
        %354 = vmatprep.subr.bf16.mxu0 0
        %355 = vmatpush1.bf16.msra.mxu0 0
        %356 = vmatprep.subr.bf16.mxu0 0
        %357 = vmatpush1.bf16.msra.mxu0 0
        %358 = vmatprep.subr.bf16.mxu0 0
        %359 = vmatpush1.bf16.msra.mxu0 0
        %360 = vmatprep.subr.bf16.mxu0 0
        %361 = vmatpush1.bf16.msra.mxu0 0
        %362 = vmatprep.subr.bf16.mxu0 0
        %363 = vmatpush1.bf16.msra.mxu0 0
        %364 = vmatprep.subr.bf16.mxu0 0
        %365 = vmatpush1.bf16.msra.mxu0 0
        %366 = vmatprep.subr.bf16.mxu0 0
        %367 = vmatpush1.bf16.msra.mxu0 %v352
        %368 = vmatprep.subr.bf16.mxu0 0
        %369 = vmatpush1.bf16.msra.mxu0 %v338
        %370 = vmatprep.subr.bf16.mxu0 0
        %371 = vmatpush2.bf16.msra.mxu0 0
        %372 = vmatprep.subr.bf16.mxu0 0
        %373 = vmatpush2.bf16.msra.mxu0 0
        %374 = vmatprep.subr.bf16.mxu0 0
        %375 = vmatpush2.bf16.msra.mxu0 0
        %376 = vmatprep.subr.bf16.mxu0 0
        %377 = vmatpush2.bf16.msra.mxu0 0
        %378 = vmatprep.subr.bf16.mxu0 0
        %379 = vmatpush2.bf16.msra.mxu0 0
        %380 = vmatprep.subr.bf16.mxu0 0
        %381 = vmatpush2.bf16.msra.mxu0 0
        %382 = vmatprep.subr.bf16.mxu0 0
        %383 = vmatpush2.bf16.msra.mxu0 0
        %384 = vmatprep.subr.bf16.mxu0 0
        %385 = vmatpush2.bf16.msra.mxu0 0
        %386 = vmatprep.mubr.bf16.mxu0 0
        %387 = vmatmul.mubr.bf16.gmra.mxu0 %v349
        %v388 = vpop.f32.mrf.mxu0
        %v389 = vadd.f32 %v345, %v388
        %v390 = vpop.f32.mrf.mxu0
        %v391 = vpop.f32.mrf.mxu0
        %v392 = vpop.f32.mrf.mxu0
        %393 = vdwg.mxu0
        %vm394 = vcmp.ge.f32.partialorder %v389, 0.0
        %v395 = vmul.f32 %v389, 0.01
        %v396 = vsel %vm394, %v389, %v395
        %v397 = vpack.c.bf16 %v396, %v396
        %v398 = vld [vmem:[#allocation3] sm:$0xf]
        %400 = vrot.lane.b32.xlu0 %v397, 4
        %v401 = vpop.permute.xlu0 %400
        %v404 = vsel %vm317, %v398, %v401
        %v406 = vrot.slane %v404, 4
        %v407 = vrot.slane %v401, 4
        %408 = vrot.lane.b32.xlu0 %v406, 126
        %v409 = vpop.permute.xlu0 %408
        %410 = vrot.lane.b32.xlu0 %v407, 126
        %v411 = vpop.permute.xlu0 %410
        %v412 = vsel %vm328, %v409, %v411
        %413 = vrot.lane.b32.xlu0 %v404, 124
        %v414 = vpop.permute.xlu0 %413
        %415 = vrot.lane.b32.xlu0 %v401, 124
        %v416 = vpop.permute.xlu0 %415
        %v417 = vsel %vm334, %v414, %v416
        %v419 = vsel %vm336, %v404, %v412
        %v421 = vld [vmem:[%s3] sm:$0xf]
        %v422 = vld [vmem:[%s4] sm:$0xff]
        %424 = vset.pattern.permute.xlu0 0
        %425 = vperm.xlu0 %424, %v422
        %v426 = vpop.permute.xlu0 %425
        %v429 = vsel %vm347, %v421, 0
        %v432 = vsel %vm336, %v417, 0
        %434 = vmatprep.subr.bf16.mxu0 0
        %435 = vmatpush1.bf16.msra.mxu0 0
        %436 = vmatprep.subr.bf16.mxu0 0
        %437 = vmatpush1.bf16.msra.mxu0 0
        %438 = vmatprep.subr.bf16.mxu0 0
        %439 = vmatpush1.bf16.msra.mxu0 0
        %440 = vmatprep.subr.bf16.mxu0 0
        %441 = vmatpush1.bf16.msra.mxu0 0
        %442 = vmatprep.subr.bf16.mxu0 0
        %443 = vmatpush1.bf16.msra.mxu0 0
        %444 = vmatprep.subr.bf16.mxu0 0
        %445 = vmatpush1.bf16.msra.mxu0 0
        %446 = vmatprep.subr.bf16.mxu0 0
        %447 = vmatpush1.bf16.msra.mxu0 %v432
        %448 = vmatprep.subr.bf16.mxu0 0
        %449 = vmatpush1.bf16.msra.mxu0 %v419
        %450 = vmatprep.subr.bf16.mxu0 0
        %451 = vmatpush2.bf16.msra.mxu0 0
        %452 = vmatprep.subr.bf16.mxu0 0
        %453 = vmatpush2.bf16.msra.mxu0 0
        %454 = vmatprep.subr.bf16.mxu0 0
        %455 = vmatpush2.bf16.msra.mxu0 0
        %456 = vmatprep.subr.bf16.mxu0 0
        %457 = vmatpush2.bf16.msra.mxu0 0
        %458 = vmatprep.subr.bf16.mxu0 0
        %459 = vmatpush2.bf16.msra.mxu0 0
        %460 = vmatprep.subr.bf16.mxu0 0
        %461 = vmatpush2.bf16.msra.mxu0 0
        %462 = vmatprep.subr.bf16.mxu0 0
        %463 = vmatpush2.bf16.msra.mxu0 0
        %464 = vmatprep.subr.bf16.mxu0 0
        %465 = vmatpush2.bf16.msra.mxu0 0
        %466 = vmatprep.mubr.bf16.mxu0 0
        %467 = vmatmul.mubr.bf16.gmra.mxu0 %v429
        %v468 = vpop.f32.mrf.mxu0
        %v469 = vadd.f32 %v426, %v468
        %v470 = vpop.f32.mrf.mxu0
        %v471 = vpop.f32.mrf.mxu0
        %v472 = vpop.f32.mrf.mxu0
        %473 = vdwg.mxu0
        %vm474 = vcmp.ge.f32.partialorder %v469, 0.0
        %v475 = vmul.f32 %v469, 0.01
        %v476 = vsel %vm474, %v469, %v475
        %v477 = vld [vmem:[%s5] sm:$0xf]
        %v478 = vld [vmem:[%s6] sm:$0xff]
        %480 = vset.pattern.permute.xlu0 0
        %481 = vperm.xlu0 %480, %v478
        %v482 = vpop.permute.xlu0 %481
        %vm484 = vcmask 64512
        %v486 = vsel %vm484, %v477, 0
        %v489 = vsel %vm336, %v310, 0
        %491 = vmatprep.subr.bf16.mxu0 0
        %492 = vmatpush1.bf16.msra.mxu0 0
        %493 = vmatprep.subr.bf16.mxu0 0
        %494 = vmatpush1.bf16.msra.mxu0 0
        %495 = vmatprep.subr.bf16.mxu0 0
        %496 = vmatpush1.bf16.msra.mxu0 0
        %497 = vmatprep.subr.bf16.mxu0 0
        %498 = vmatpush1.bf16.msra.mxu0 0
        %499 = vmatprep.subr.bf16.mxu0 0
        %500 = vmatpush1.bf16.msra.mxu0 0
        %501 = vmatprep.subr.bf16.mxu0 0
        %502 = vmatpush1.bf16.msra.mxu0 0
        %503 = vmatprep.subr.bf16.mxu0 0
        %504 = vmatpush1.bf16.msra.mxu0 0
        %505 = vmatprep.subr.bf16.mxu0 0
        %506 = vmatpush1.bf16.msra.mxu0 %v489
        %507 = vmatprep.subr.bf16.mxu0 0
        %508 = vmatpush2.bf16.msra.mxu0 0
        %509 = vmatprep.subr.bf16.mxu0 0
        %510 = vmatpush2.bf16.msra.mxu0 0
        %511 = vmatprep.subr.bf16.mxu0 0
        %512 = vmatpush2.bf16.msra.mxu0 0
        %513 = vmatprep.subr.bf16.mxu0 0
        %514 = vmatpush2.bf16.msra.mxu0 0
        %515 = vmatprep.subr.bf16.mxu0 0
        %516 = vmatpush2.bf16.msra.mxu0 0
        %517 = vmatprep.subr.bf16.mxu0 0
        %518 = vmatpush2.bf16.msra.mxu0 0
        %519 = vmatprep.subr.bf16.mxu0 0
        %520 = vmatpush2.bf16.msra.mxu0 0
        %521 = vmatprep.subr.bf16.mxu0 0
        %522 = vmatpush2.bf16.msra.mxu0 0
        %523 = vmatprep.mubr.bf16.mxu0 0
        %524 = vmatmul.mubr.bf16.gmra.mxu0 %v486
        %v525 = vpop.f32.mrf.mxu0
        %v526 = vadd.f32 %v482, %v525
        %v527 = vpop.f32.mrf.mxu0
        %v528 = vpop.f32.mrf.mxu0
        %v529 = vpop.f32.mrf.mxu0
        %530 = vdwg.mxu0
        %v531 = vadd.f32 %v476, %v526
        %532 = vst [vmem:[%s293] sm:$0xff] %v531
        %533 = vrot.lane.b32.xlu0 %v310, 4
        %v534 = vpop.permute.xlu0 %533
        %vm536 = vcmask 27648
        %537 = vst.msk [vmem:[#allocation2] sm:$0xf] %vm536, %v534
        %v538 = vunpack.c.l.b16 %v397
        %v539 = vpack.c.b16 %v538, %v538
        %540 = vrot.lane.b32.xlu0 %v539, 4
        %v541 = vpop.permute.xlu0 %540
        %543 = vst.msk [vmem:[#allocation3] sm:$0xf] %vm536, %v541
        %s544 = sand.u32 %s197, 1
        %s545 = scalar_lea.sflag [#allocation5], %s544
        %s546 = sand.u32 %s197, 1
        %s547 = smul.addr %s546, 8
        %s548 = scalar_lea.vmem [#allocation4], %s547
        // Predicated region
        $region53: #{tpu_custom_call.1} parent=47 // pred_check
          %p549 = pneg %p207
        $region54: #{tpu_custom_call.1} parent=47 // pred_check_branch
          %551 = sbr.rel (%p549) target = $region56
        $region55: #{tpu_custom_call.1} parent=47 // pred_region
          %s553 = ssub.s32 128, 128
          %554 = vsyncadd %s545, %s553
          %s555 = smul.addr %s25, 3
          %s556 = sadd.s32 %s26, %s555
          %s557 = smul.addr %s556, 128
          %s558 = scalar_lea.hbm %s7, %s557
          %s560 = sshll.u32 %s548, 4
          %s561 = int_to_ptr.vmem [resolvable:$true] %s560
          %563 = dma.vmem_to_hbm [thread:$0]  %s561, 128, %s558, %s545
        $region56: #{tpu_custom_call.1} parent=47 // pred_fallthru
          _
      $region48: #{tpu_custom_call.1} parent=5 // pred_fallthru
        _
      %p564 = scmp.le.s32.totalorder 2, %s16
      // Predicated region
      $region57: #{tpu_custom_call.1} parent=5 // pred_check
        %p565 = pneg %p564
      $region58: #{tpu_custom_call.1} parent=5 // pred_check_branch
        %567 = sbr.rel (%p565) target = $region60
      $region59: #{tpu_custom_call.1} parent=5 // pred_region
        %s568 = ssub.s32 %s16, 2
        // Predicated region
        $region61: #{tpu_custom_call.1} parent=59 // pred_check
          %p569 = pneg %p213
        $region62: #{tpu_custom_call.1} parent=59 // pred_check_branch
          %571 = sbr.rel (%p569) target = $region64
        $region63: #{tpu_custom_call.1} parent=59 // pred_region
          %s572 = sand.u32 %s198, 1
          %s573 = scalar_lea.sflag [#allocation5], %s572
          %s574 = sand.u32 %s198, 1
          %s575 = smul.addr %s574, 8
          %s576 = scalar_lea.vmem [#allocation4], %s575
          %577 = dma.done %s573, 128
        $region64: #{tpu_custom_call.1} parent=59 // pred_fallthru
          _
      $region60: #{tpu_custom_call.1} parent=5 // pred_fallthru
        _
    $region6: #{tpu_custom_call.1} parent=1 // loop_footer
      %s20 = sadd.s32 1, %s16
    $region7: #{tpu_custom_call.1} parent=1 // loop_footer_branch
      %15 = sbr.rel target = $region3
    $region8: #{tpu_custom_call.1} parent=1 // loop_exit
      _
    %578 = vsyncpa [#allocation5], 1
    %s579 = scalar_lea.sflag [#allocation5], 1
    %580 = vsyncpa %s579, 1

</llo_original>
